<compile_context>
chip_gen: v7x
topology: tpu7x:2x2x1
jax: 0.10.0
libtpu: 0.0.40
codegen_flags: <defaults>
</compile_context>

<pallas_src>
import math
from functools import partial

import jax
import jax.numpy as jnp
from jax import lax
from jax.experimental import pallas as pl
from jax.experimental.pallas import tpu as pltpu

MM_DTYPE = jnp.bfloat16            # MXU operand dtype (accumulation stays f32)
_VMEM_LIMIT = 48 * 1024 * 1024     # explicit scoped-VMEM budget (safe on v5e/v6e/v7x)


# ----------------------------------------------------------------------------
# Wrapper-side weight preparation
# ----------------------------------------------------------------------------
def _toeplitz_conv_weight(w, W):
    """(3,3,Cin,Cout) conv weight -> (3, W*Cin, W*Cout) banded (block-Toeplitz) bf16 matrices,
    one per kernel row dy.  The dx taps and the column zero-padding are folded into a matmul
    over the lane-flattened (W*Cin) axis, so the kernel needs no im2col and no column halo."""
    kh, kw, Cin, Cout = w.shape
    # S[dx][xin, xcol] = 1  iff  xin == xcol + dx - 1
    S = jnp.stack([jnp.eye(W, W, k=1 - dx, dtype=w.dtype) for dx in range(kw)])   # (3, W, W)
    T = jnp.einsum('dpq,ydio->ypiqo', S, w)                                       # (3,W,Cin,W,Cout)
    return T.reshape(kh, W * Cin, W * Cout).astype(MM_DTYPE)


def _tile_bias(b, W):
    """(Cout,) -> (1, W*Cout) f32, matching the flat (xcol*Cout + co) lane layout."""
    return jnp.tile(b, W).reshape(1, W * b.shape[0]).astype(jnp.float32)


def _pad_cout(W, cout):
    """Smallest c >= cout with (W*c) % 128 == 0 (lane-dense output slab)."""
    c = cout
    while (W * c) % 128 != 0:
        c += 1
    return c


# ----------------------------------------------------------------------------
# Pallas kernels
# ----------------------------------------------------------------------------
def _make_conv_kernel(H, fuse_skip):
    """3x3 'same' conv over one whole image in flat layout: (H, W*Cin) -> (H, W*Cout).
    Row halo via two row-shifted partial matmuls; optional fused residual add."""
    def kernel(*refs):
        if fuse_skip:
            x_ref, w_ref, b_ref, s_ref, o_ref = refs
        else:
            x_ref, w_ref, b_ref, o_ref = refs
        xb = x_ref[0].astype(MM_DTYPE)                                   # (H, W*Cin)
        out = jnp.dot(xb, w_ref[1], preferred_element_type=jnp.float32) + b_ref[...]
        if fuse_skip:
            out = out + s_ref[0]
        o_ref[0] = out.astype(o_ref.dtype)
        # dy = 0 contributes to output rows 1..H-1 (row -1 is zero padding).
        o_ref[0, 1:, :] += jnp.dot(xb[:H - 1, :], w_ref[0],
                                   preferred_element_type=jnp.float32)
        # dy = 2 contributes to output rows 0..H-2 (row H is zero padding).
        o_ref[0, :H - 1, :] += jnp.dot(xb[1:, :], w_ref[2],
                                       preferred_element_type=jnp.float32)
    return kernel


def _make_rcab_kernel(H, res_scale):
    """Whole RCAB fused: conv3x3 -> ReLU -> conv3x3 -> channel attention -> scaled residual."""
    def kernel(x_ref, w1_ref, b1_ref, w2_ref, b2_ref,
               wd_ref, bd_ref, wu_ref, bu_ref, o_ref, acc_ref):
        x = x_ref[0]                                                     # (H, N) f32
        xb = x.astype(MM_DTYPE)

        # conv1 (+ReLU) — banded matmul over lanes, row halo via split matmuls.
        acc_ref[...] = jnp.dot(xb, w1_ref[1], preferred_element_type=jnp.float32)
        acc_ref[1:, :] += jnp.dot(xb[:H - 1, :], w1_ref[0],
                                  preferred_element_type=jnp.float32)
        acc_ref[:H - 1, :] += jnp.dot(xb[1:, :], w1_ref[2],
                                      preferred_element_type=jnp.float32)
        hb = jnp.maximum(acc_ref[...] + b1_ref[...], 0.0).astype(MM_DTYPE)

        # conv2 — same structure; h never leaves VMEM/vregs.
        acc_ref[...] = jnp.dot(hb, w2_ref[1], preferred_element_type=jnp.float32)
        acc_ref[1:, :] += jnp.dot(hb[:H - 1, :], w2_ref[0],
                                  preferred_element_type=jnp.float32)
        acc_ref[:H - 1, :] += jnp.dot(hb[1:, :], w2_ref[2],
                                      preferred_element_type=jnp.float32)
        r = acc_ref[...] + b2_ref[...]                                   # (H, N) f32

        # Channel attention: avg-pool + per-channel broadcast folded into the flat MLP weights,
        # so everything stays lane-aligned with r (no tiny relayouts).
        rsum = jnp.sum(r, axis=0, keepdims=True)                         # (1, N)
        h1 = jnp.maximum(
            jnp.dot(rsum, wd_ref[...], preferred_element_type=jnp.float32) + bd_ref[...],
            0.0)                                                         # (1, Cr)
        s = jax.nn.sigmoid(
            jnp.dot(h1, wu_ref[...], preferred_element_type=jnp.float32) + bu_ref[...])  # (1, N)

        o_ref[0] = (r * s * res_scale + x).astype(o_ref.dtype)
    return kernel


# ----------------------------------------------------------------------------
# Pallas-backed layer wrappers
# ----------------------------------------------------------------------------
def conv3x3(x_flat, H, W, Cin, w, b, skip=None):
    """3x3 same-padding conv in the flat layout.  Optional fused residual: conv(x) + skip."""
    B = x_flat.shape[0]
    Cout = w.shape[-1]
    Nin, Nout = W * Cin, W * Cout
    T = _toeplitz_conv_weight(w, W)                                      # (3, Nin, Nout) bf16
    bf = _tile_bias(b, W)                                                # (1, Nout)   f32

    in_specs = [
        pl.BlockSpec((1, H, Nin), lambda bb: (bb, 0, 0)),
        pl.BlockSpec((3, Nin, Nout), lambda bb: (0, 0, 0)),
        pl.BlockSpec((1, Nout), lambda bb: (0, 0)),
    ]
    args = [x_flat, T, bf]
    if skip is not None:
        in_specs.append(pl.BlockSpec((1, H, Nout), lambda bb: (bb, 0, 0)))
        args.append(skip)

    return pl.pallas_call(
        _make_conv_kernel(H, skip is not None),
        out_shape=jax.ShapeDtypeStruct((B, H, Nout), x_flat.dtype),
        grid=(B,),
        in_specs=in_specs,
        out_specs=pl.BlockSpec((1, H, Nout), lambda bb: (bb, 0, 0)),
        compiler_params=pltpu.CompilerParams(
            dimension_semantics=("parallel",),
            vmem_limit_bytes=_VMEM_LIMIT),
    )(*args)


def rcab_fused(x_flat, H, W, C, p, res_scale=1.0):
    """Whole RCAB as one pallas_call (conv1 + ReLU + conv2 + CA + scaled residual)."""
    B = x_flat.shape[0]
    N = W * C
    (w1, b1), (w2, b2) = p["conv1"], p["conv2"]
    wd, bd, wu, bu = p["ca"]
    Cr = wd.shape[1]

    T1 = _toeplitz_conv_weight(w1, W)
    T2 = _toeplitz_conv_weight(w2, W)
    b1f = _tile_bias(b1, W)
    b2f = _tile_bias(b2, W)
    # Fold the global average pool (1/(H*W) + sum over columns) into the first MLP weight and
    # the per-channel broadcast back to (W*C) lanes into the second MLP weight/bias.
    wdf = (jnp.tile(wd, (W, 1)) * (1.0 / float(H * W))).astype(jnp.float32)   # (N, Cr)
    bdf = bd.reshape(1, Cr).astype(jnp.float32)
    wuf = jnp.tile(wu, (1, W)).astype(jnp.float32)                            # (Cr, N)
    buf = jnp.tile(bu, W).reshape(1, N).astype(jnp.float32)

    return pl.pallas_call(
        _make_rcab_kernel(H, float(res_scale)),
        out_shape=jax.ShapeDtypeStruct((B, H, N), x_flat.dtype),
        grid=(B,),
        in_specs=[
            pl.BlockSpec((1, H, N), lambda bb: (bb, 0, 0)),
            pl.BlockSpec((3, N, N), lambda bb: (0, 0, 0)),
            pl.BlockSpec((1, N), lambda bb: (0, 0)),
            pl.BlockSpec((3, N, N), lambda bb: (0, 0, 0)),
            pl.BlockSpec((1, N), lambda bb: (0, 0)),
            pl.BlockSpec((N, Cr), lambda bb: (0, 0)),
            pl.BlockSpec((1, Cr), lambda bb: (0, 0)),
            pl.BlockSpec((Cr, N), lambda bb: (0, 0)),
            pl.BlockSpec((1, N), lambda bb: (0, 0)),
        ],
        out_specs=pl.BlockSpec((1, H, N), lambda bb: (bb, 0, 0)),
        scratch_shapes=[pltpu.VMEM((H, N), jnp.float32)],
        compiler_params=pltpu.CompilerParams(
            dimension_semantics=("parallel",),
            vmem_limit_bytes=_VMEM_LIMIT),
    )(x_flat, T1, b1f, T2, b2f, wdf, bdf, wuf, buf)


def _pixel_shuffle_flat(x_flat, H, W, C4):
    """nn.PixelShuffle(2) semantics in the flat layout: (B, H, W*4c) -> (B, 2H, 2W*c)."""
    B = x_flat.shape[0]
    c = C4 // 4
    x = x_flat.reshape(B, H, W, c, 2, 2)
    x = x.transpose(0, 1, 4, 2, 5, 3)                 # (B, H, 2, W, 2, c)
    return x.reshape(B, 2 * H, 2 * W * c)


# ----------------------------------------------------------------------------
# Parameter construction (deterministic, synthetic)
# ----------------------------------------------------------------------------
def make_nlrn_params(key, n_feats, n_colors, reduction,
                     n_nlrgs_body, n_nlrgs_up1, n_nlrgs_up2,
                     n_subgroups, n_rcabs):
    cnt = [0]

    def nk():
        cnt[0] += 1
        return jax.random.fold_in(key, cnt[0])

    def conv_p(cin, cout, k=3):
        w = jax.random.normal(nk(), (k, k, cin, cout), jnp.float32) \
            * (1.0 / math.sqrt(k * k * cin))
        b = jax.random.normal(nk(), (cout,), jnp.float32) * 0.01
        return (w, b)

    def ca_p(c, r):
        cr = max(c // r, 1)
        w1 = jax.random.normal(nk(), (c, cr), jnp.float32) * (1.0 / math.sqrt(c))
        b1 = jnp.zeros((cr,), jnp.float32)
        w2 = jax.random.normal(nk(), (cr, c), jnp.float32) * (1.0 / math.sqrt(cr))
        b2 = jnp.zeros((c,), jnp.float32)
        return (w1, b1, w2, b2)

    def rcab_p():
        return {"conv1": conv_p(n_feats, n_feats),
                "conv2": conv_p(n_feats, n_feats),
                "ca": ca_p(n_feats, reduction)}

    def subgroup_p():
        return {"rcabs": [rcab_p() for _ in range(n_rcabs)],
                "conv": conv_p(n_feats, n_feats)}

    def nlrg_p():
        return {"subgroups": [subgroup_p() for _ in range(n_subgroups)],
                "conv": conv_p(n_feats, n_feats)}

    def stack_p(n):
        return {"nlrgs": [nlrg_p() for _ in range(n)],
                "conv": conv_p(n_feats, n_feats)}

    return {
        "body": stack_p(n_nlrgs_body),
        "up_body_1": stack_p(n_nlrgs_up1),
        "upsampler_1": conv_p(n_feats, 4 * n_feats),
        "up_body_2": stack_p(n_nlrgs_up2),
        "upsampler_2": conv_p(n_feats, 4 * n_feats),
        "tail": [conv_p(n_feats, n_feats), conv_p(n_feats, n_colors)],
    }


# ----------------------------------------------------------------------------
# NLRN forward pass (mirrors the PyTorch module structure)
# ----------------------------------------------------------------------------
def nlrn_forward(x_feat, params, res_scale=1.0):
    B, H0, W0, C = x_feat.shape
    x = x_feat.reshape(B, H0, W0 * C)

    def subgroup_f(x, hh, ww, p):
        # TODO(synk): NonLocalBlock definition is not present in the provided source -> identity.
        r = x
        for rp in p["rcabs"]:
            r = rcab_fused(r, hh, ww, C, rp, res_scale)
        return conv3x3(r, hh, ww, C, *p["conv"], skip=x)

    def nlrg_f(x, hh, ww, p):
        r = x
        for sp in p["subgroups"]:
            r = subgroup_f(r, hh, ww, sp)
        return conv3x3(r, hh, ww, C, *p["conv"], skip=x)

    def stack_f(x, hh, ww, p):
        r = x
        for np_ in p["nlrgs"]:
            r = nlrg_f(r, hh, ww, np_)
        return conv3x3(r, hh, ww, C, *p["conv"], skip=x)

    hh, ww = H0, W0
    x_body = stack_f(x, hh, ww, params["body"])
    x_up_body_1 = stack_f(x_body, hh, ww, params["up_body_1"])

    r = conv3x3(x_up_body_1, hh, ww, C, *params["upsampler_1"])     # -> 4C channels
    x_up_1 = _pixel_shuffle_flat(r, hh, ww, 4 * C)
    hh, ww = 2 * hh, 2 * ww

    x_up_body_2 = stack_f(x_up_1, hh, ww, params["up_body_2"])
    r = conv3x3(x_up_body_2, hh, ww, C, *params["upsampler_2"])
    x_up_2 = _pixel_shuffle_flat(r, hh, ww, 4 * C)
    hh, ww = 2 * hh, 2 * ww

    t = conv3x3(x_up_2, hh, ww, C, *params["tail"][0])

    # Final conv to n_colors: pad Cout so the flat output width is a multiple of 128
    # (unmasked stores), then slice the real channels back.
    wt, bt = params["tail"][1]
    n_colors = wt.shape[-1]
    cpad = _pad_cout(ww, n_colors)
    if cpad != n_colors:
        wt = jnp.pad(wt, ((0, 0), (0, 0), (0, 0), (0, cpad - n_colors)))
        bt = jnp.pad(bt, (0, cpad - n_colors))
    sr = conv3x3(t, hh, ww, C, wt, bt)
    return sr.reshape(B, hh, ww, cpad)[..., :n_colors]


# ----------------------------------------------------------------------------
# Pure-JAX references for light-weight self-checks
# ----------------------------------------------------------------------------
def _rcab_ref(x_nhwc, p, res_scale):
    dn = ('NHWC', 'HWIO', 'NHWC')
    (w1, b1), (w2, b2) = p["conv1"], p["conv2"]
    wd, bd, wu, bu = p["ca"]
    h = lax.conv_general_dilated(x_nhwc, w1, (1, 1), 'SAME', dimension_numbers=dn) + b1
    h = jnp.maximum(h, 0.0)
    r = lax.conv_general_dilated(h, w2, (1, 1), 'SAME', dimension_numbers=dn) + b2
    y = jnp.mean(r, axis=(1, 2))                                     # (B, C)
    a = jnp.maximum(y @ wd + bd, 0.0)
    s = jax.nn.sigmoid(a @ wu + bu)                                  # (B, C)
    return r * s[:, None, None, :] * res_scale + x_nhwc


# ----------------------------------------------------------------------------
# Main
# ----------------------------------------------------------------------------
if __name__ == "__main__":
    # Small-but-consistent configuration of NLRN.
    n_colors = 3
    n_feats = 32
    reduction = 4
    res_scale = 1.0
    n_nlrgs_body = 1
    n_nlrgs_up1 = 1
    n_nlrgs_up2 = 1
    n_subgroups = 1
    n_rcabs = 1

    key = jax.random.PRNGKey(0)
    k_in, k_par = jax.random.split(key)

    # Layout: NHWC. Corresponds to a PyTorch NCHW input of shape (2, 32, 8, 8).
    B, H, W = 2, 8, 8
    x_feat = jax.random.normal(k_in, (B, H, W, n_feats), jnp.float32)

    params = make_nlrn_params(
        k_par, n_feats, n_colors, reduction,
        n_nlrgs_body, n_nlrgs_up1, n_nlrgs_up2, n_subgroups, n_rcabs)

    # --- numerical self-checks of the Pallas building blocks (loose bf16 tolerances) ---
    dn = ('NHWC', 'HWIO', 'NHWC')
    wc, bc = params["tail"][0]
    y_k = conv3x3(x_feat.reshape(B, H, W * n_feats), H, W, n_feats, wc, bc)
    y_k = y_k.reshape(B, H, W, n_feats)
    y_r = lax.conv_general_dilated(x_feat, wc, (1, 1), 'SAME', dimension_numbers=dn) + bc
    assert float(jnp.max(jnp.abs(y_k - y_r))) < 1e-1, "conv3x3 self-check failed"

    rp = params["body"]["nlrgs"][0]["subgroups"][0]["rcabs"][0]
    z_k = rcab_fused(x_feat.reshape(B, H, W * n_feats), H, W, n_feats, rp,
                     res_scale).reshape(B, H, W, n_feats)
    z_r = _rcab_ref(x_feat, rp, res_scale)
    assert float(jnp.max(jnp.abs(z_k - z_r))) < 2e-1, "fused RCAB self-check failed"

    # --- full forward pass ---
    fwd = jax.jit(partial(nlrn_forward, params=params, res_scale=res_scale))
    sr = jax.block_until_ready(fwd(x_feat))

    expected_shape = (B, H * 4, W * 4, n_colors)   # two 2x PixelShuffle upsamplers
    assert sr.shape == expected_shape, (sr.shape, expected_shape)
    assert bool(jnp.all(jnp.isfinite(sr)))
    print("KERNEL_OK")
</pallas_src>

<mosaic_0001>
module attributes {stable_mosaic.version = 11 : i64} {
  func.func @kernel(%arg0: i32, %arg1: memref<1x8x256xf32, #tpu.memory_space<vmem>>, %arg2: memref<3x256x256xbf16, #tpu.memory_space<vmem>>, %arg3: memref<1x256xf32, #tpu.memory_space<vmem>>, %arg4: memref<1x8x256xf32, #tpu.memory_space<vmem>>) attributes {dimension_semantics = [#tpu.dimension_semantics<parallel>], iteration_bounds = array<i64: 2>, scalar_prefetch = 0 : i64, scratch_operands = 0 : i64, tpu.core_type = #tpu.core_type<tc>, window_params = [{transform_indices = @transform_0, window_bounds = array<i64: 1, 8, 256>}, {pipeline_mode = #tpu.pipeline_mode<synchronous>, transform_indices = @transform_1, window_bounds = array<i64: 3, 256, 256>}, {pipeline_mode = #tpu.pipeline_mode<synchronous>, transform_indices = @transform_2, window_bounds = array<i64: 1, 256>}, {transform_indices = @transform_3, window_bounds = array<i64: 1, 8, 256>}]} {
    %c0 = arith.constant 0 : index
    %c0_0 = arith.constant 0 : index
    %c0_1 = arith.constant 0 : index
    %0 = vector.load %arg1[%c0, %c0_0, %c0_1] : memref<1x8x256xf32, #tpu.memory_space<vmem>>, vector<1x8x256xf32>
    %1 = vector.shape_cast %0 : vector<1x8x256xf32> to vector<8x256xf32>
    %2 = arith.truncf %1 : vector<8x256xf32> to vector<8x256xbf16>
    %c1 = arith.constant 1 : index
    %c0_2 = arith.constant 0 : index
    %c0_3 = arith.constant 0 : index
    %3 = vector.load %arg2[%c1, %c0_2, %c0_3] : memref<3x256x256xbf16, #tpu.memory_space<vmem>>, vector<1x256x256xbf16>
    %4 = vector.shape_cast %3 : vector<1x256x256xbf16> to vector<256x256xbf16>
    %cst = arith.constant dense<0.000000e+00> : vector<8x256xf32>
    %5 = tpu.matmul %2, %4, %cst {dimension_numbers = #tpu.dot_dimension_numbers<[1], [0], [0], [1], [0, 0, 1, 1], [], []>} : vector<8x256xbf16>, vector<256x256xbf16>, vector<8x256xf32> -> vector<8x256xf32>
    %c0_4 = arith.constant 0 : index
    %c0_5 = arith.constant 0 : index
    %6 = vector.load %arg3[%c0_4, %c0_5] : memref<1x256xf32, #tpu.memory_space<vmem>>, vector<1x256xf32>
    %7 = vector.broadcast %6 : vector<1x256xf32> to vector<8x256xf32>
    %8 = arith.addf %5, %7 : vector<8x256xf32>
    %c0_6 = arith.constant 0 : index
    %c0_7 = arith.constant 0 : index
    %c0_8 = arith.constant 0 : index
    %9 = vector.load %arg4[%c0_6, %c0_7, %c0_8] : memref<1x8x256xf32, #tpu.memory_space<vmem>>, vector<1x8x256xf32>
    %10 = vector.shape_cast %9 : vector<1x8x256xf32> to vector<8x256xf32>
    %11 = vector.shape_cast %8 : vector<8x256xf32> to vector<1x8x256xf32>
    tpu.vector_store %arg4[%c0_6, %c0_7, %c0_8], %11 {strides = array<i32>} : memref<1x8x256xf32, #tpu.memory_space<vmem>>, vector<1x8x256xf32>,
    %c0_9 = arith.constant 0 : index
    %c1_10 = arith.constant 1 : index
    %c0_11 = arith.constant 0 : index
    %12 = vector.load %arg4[%c0_9, %c1_10, %c0_11] : memref<1x8x256xf32, #tpu.memory_space<vmem>>, vector<1x7x256xf32>
    %13 = vector.shape_cast %12 : vector<1x7x256xf32> to vector<7x256xf32>
    %14 = vector.extract_strided_slice %2 {offsets = [0, 0], sizes = [7, 256], strides = [1, 1]} : vector<8x256xbf16> to vector<7x256xbf16>
    %c0_12 = arith.constant 0 : index
    %c0_13 = arith.constant 0 : index
    %c0_14 = arith.constant 0 : index
    %15 = vector.load %arg2[%c0_12, %c0_13, %c0_14] : memref<3x256x256xbf16, #tpu.memory_space<vmem>>, vector<1x256x256xbf16>
    %16 = vector.shape_cast %15 : vector<1x256x256xbf16> to vector<256x256xbf16>
    %cst_15 = arith.constant dense<0.000000e+00> : vector<7x256xf32>
    %17 = tpu.matmul %14, %16, %cst_15 {dimension_numbers = #tpu.dot_dimension_numbers<[1], [0], [0], [1], [0, 0, 1, 1], [], []>} : vector<7x256xbf16>, vector<256x256xbf16>, vector<7x256xf32> -> vector<7x256xf32>
    %18 = arith.addf %13, %17 : vector<7x256xf32>
    %c0_16 = arith.constant 0 : index
    %c1_17 = arith.constant 1 : index
    %c0_18 = arith.constant 0 : index
    %19 = vector.load %arg4[%c0_16, %c1_17, %c0_18] : memref<1x8x256xf32, #tpu.memory_space<vmem>>, vector<1x7x256xf32>
    %20 = vector.shape_cast %19 : vector<1x7x256xf32> to vector<7x256xf32>
    %21 = vector.shape_cast %18 : vector<7x256xf32> to vector<1x7x256xf32>
    tpu.vector_store %arg4[%c0_16, %c1_17, %c0_18], %21 {strides = array<i32>} : memref<1x8x256xf32, #tpu.memory_space<vmem>>, vector<1x7x256xf32>,
    %c0_19 = arith.constant 0 : index
    %c0_20 = arith.constant 0 : index
    %c0_21 = arith.constant 0 : index
    %22 = vector.load %arg4[%c0_19, %c0_20, %c0_21] : memref<1x8x256xf32, #tpu.memory_space<vmem>>, vector<1x7x256xf32>
    %23 = vector.shape_cast %22 : vector<1x7x256xf32> to vector<7x256xf32>
    %24 = vector.extract_strided_slice %2 {offsets = [1, 0], sizes = [7, 256], strides = [1, 1]} : vector<8x256xbf16> to vector<7x256xbf16>
    %c2 = arith.constant 2 : index
    %c0_22 = arith.constant 0 : index
    %c0_23 = arith.constant 0 : index
    %25 = vector.load %arg2[%c2, %c0_22, %c0_23] : memref<3x256x256xbf16, #tpu.memory_space<vmem>>, vector<1x256x256xbf16>
    %26 = vector.shape_cast %25 : vector<1x256x256xbf16> to vector<256x256xbf16>
    %cst_24 = arith.constant dense<0.000000e+00> : vector<7x256xf32>
    %27 = tpu.matmul %24, %26, %cst_24 {dimension_numbers = #tpu.dot_dimension_numbers<[1], [0], [0], [1], [0, 0, 1, 1], [], []>} : vector<7x256xbf16>, vector<256x256xbf16>, vector<7x256xf32> -> vector<7x256xf32>
    %28 = arith.addf %23, %27 : vector<7x256xf32>
    %c0_25 = arith.constant 0 : index
    %c0_26 = arith.constant 0 : index
    %c0_27 = arith.constant 0 : index
    %29 = vector.load %arg4[%c0_25, %c0_26, %c0_27] : memref<1x8x256xf32, #tpu.memory_space<vmem>>, vector<1x7x256xf32>
    %30 = vector.shape_cast %29 : vector<1x7x256xf32> to vector<7x256xf32>
    %31 = vector.shape_cast %28 : vector<7x256xf32> to vector<1x7x256xf32>
    tpu.vector_store %arg4[%c0_25, %c0_26, %c0_27], %31 {strides = array<i32>} : memref<1x8x256xf32, #tpu.memory_space<vmem>>, vector<1x7x256xf32>,
    return
  }
  func.func @transform_0(%arg0: i32) -> (i32, i32, i32) {
    %c0_i32 = arith.constant 0 : i32
    %c0_i32_0 = arith.constant 0 : i32
    %c0_i32_1 = arith.constant 0 : i32
    return %arg0, %c0_i32, %c0_i32_0 : i32, i32, i32
  }
  func.func @transform_1(%arg0: i32) -> (i32, i32, i32) {
    %c0_i32 = arith.constant 0 : i32
    %c0_i32_0 = arith.constant 0 : i32
    %c0_i32_1 = arith.constant 0 : i32
    %c0_i32_2 = arith.constant 0 : i32
    return %c0_i32, %c0_i32_0, %c0_i32_1 : i32, i32, i32
  }
  func.func @transform_2(%arg0: i32) -> (i32, i32) {
    %c0_i32 = arith.constant 0 : i32
    %c0_i32_0 = arith.constant 0 : i32
    %c0_i32_1 = arith.constant 0 : i32
    return %c0_i32, %c0_i32_0 : i32, i32
  }
  func.func @transform_3(%arg0: i32) -> (i32, i32, i32) {
    %c0_i32 = arith.constant 0 : i32
    %c0_i32_0 = arith.constant 0 : i32
    %c0_i32_1 = arith.constant 0 : i32
    return %arg0, %c0_i32, %c0_i32_0 : i32, i32, i32
  }
}

</mosaic_0001>

<llo_original>
// kernel: tpu_custom_call.1
$region0: #{tpu_custom_call.1}
  #allocation0 [shape = 'u32[]', space=smem, size = 0x4, offset = 0x4, fixed_abs, tag = 'smem constant byte address 0x4 - core index']
  #allocation1 [shape = 'u32[144,128]{1,0:T(1,128)}', space=vmem, size = 0x12000, scoped, tag = 'internal scratch']
  %s0 = inlined_call_operand.hbm [shape: f32[2,8,256], index: 0, kind: input, shape index: {}]
  %s1 = inlined_call_operand.hbm [shape: bf16[3,256,256], index: 1, kind: input, shape index: {}]
  %s2 = inlined_call_operand.vmem [shape: f32[1,256], index: 2, kind: input, shape index: {}]
  %s3 = inlined_call_operand.hbm [shape: f32[2,8,256], index: 3, kind: output, shape index: {}]
  %s4 = sld [smem:[#allocation0]]
  $region53: #{tpu_custom_call.1} parent=0
    _
  %s6 = ssub.s32 1, %s4
  %s7 = scalar_select 0, %s6, %s4
  $region1: #{tpu_custom_call.1} parent=0
    #allocation2 [shape = 'u8[16384]{0}', space=vmem, size = 0x4000, scoped, tag = 'input window, operand 0']
    #allocation3 [shape = 's32[2]{0}', space=sflag, size = 0x8, scoped, tag = 'scoped memory for tpu_custom_call.1']
    #allocation4 [shape = 's32[2]{0}', space=sflag, size = 0x8, scoped, tag = 'scoped memory for tpu_custom_call.1']
    #allocation5 [shape = 'u8[393216]{0}', space=vmem, size = 0x60000, scoped, tag = 'input window, operand 1, single buffered']
    #allocation6 [shape = 's32[1]{0}', space=sflag, size = 0x4, scoped, tag = 'scoped memory for tpu_custom_call.1']
    #allocation7 [shape = 'u8[16384]{0}', space=vmem, size = 0x4000, scoped, tag = 'output window, operand 0']
    %8 = vsyncpa [#allocation3], 0
    %s9 = scalar_lea.sflag [#allocation3], 1
    %10 = vsyncpa %s9, 0
    %11 = vsyncpa [#allocation6], 0
    %12 = vsyncpa [#allocation4], 0
    %s13 = scalar_lea.sflag [#allocation4], 1
    %14 = vsyncpa %s13, 0
    loop: start=0, step=1, limit=4
    $region2: #{tpu_custom_call.1} parent=1 // loop_pre_header
      _
    $region3: #{tpu_custom_call.1} parent=1 // loop_header
      %s16 = sphi 0, %s20
      %p17 = scmp.ge.s32.totalorder %s16, 4
      %s26 = sphi 0, %s28
      %s29 = sphi 0, %s26
      %s30 = sphi 0, %s29
      %s46 = sphi 0, %s30
      %s50 = sphi 0, %s50
      %s52 = sphi 0, %s50
      %s53 = sphi 0, %s52
      %s67 = sphi 0, %s53
      %s71 = sphi 0, %s71
      %s73 = sphi 0, %s71
      %s74 = sphi 0, %s73
      %s88 = sphi 0, %s74
      %s94 = sphi 0, %s96
      %s97 = sphi 0, %s94
      %s98 = sphi 0, %s97
      %s114 = sphi 0, %s98
    $region4: #{tpu_custom_call.1} parent=1 // loop_header_branch
      %19 = sbr.rel (%p17) target = $region8
    $region5: #{tpu_custom_call.1} parent=1 // loop_body
      %s21 = ssub.s32 %s16, 1
      %s22 = ssub.s32 %s16, 2
      %s23 = sadd.s32 %s16, 1
      %s24 = ssub.s32 %s16, %s23
      %p25 = scmp.eq.s32.totalorder %s24, 0
      %s27 = sadd.s32 %s26, 1
      %s28 = scalar_select %p25, %s26, %s27
      %p31 = pneg %p25
      %p32 = scmp.eq.s32.totalorder %s16, 1
      %p33 = por %p31, %p32
      %p34 = scmp.ne.s32.totalorder %s26, %s29
      %p35 = scmp.eq.s32.totalorder %s16, 0
      %p36 = por %p34, %p35
      %p37 = scmp.ne.s32.totalorder %s26, %s29
      %p38 = scmp.eq.s32.totalorder %s21, 1
      %p39 = por %p37, %p38
      %p40 = scmp.ne.s32.totalorder %s29, %s30
      %p41 = scmp.eq.s32.totalorder %s21, 0
      %p42 = por %p40, %p41
      %p43 = scmp.ne.s32.totalorder %s29, %s30
      %p44 = scmp.eq.s32.totalorder %s22, 1
      %p45 = por %p43, %p44
      %p47 = scmp.ne.s32.totalorder %s30, %s46
      %p48 = scmp.eq.s32.totalorder %s22, 0
      %p49 = por %p47, %p48
      %s51 = sadd.s32 %s50, 1
      %p54 = scmp.eq.s32.totalorder %s16, 1
      %p55 = scmp.ne.s32.totalorder %s50, %s52
      %p56 = scmp.eq.s32.totalorder %s16, 0
      %p57 = por %p55, %p56
      %p58 = scmp.ne.s32.totalorder %s50, %s52
      %p59 = scmp.eq.s32.totalorder %s21, 1
      %p60 = por %p58, %p59
      %p61 = scmp.ne.s32.totalorder %s52, %s53
      %p62 = scmp.eq.s32.totalorder %s21, 0
      %p63 = por %p61, %p62
      %p64 = scmp.ne.s32.totalorder %s52, %s53
      %p65 = scmp.eq.s32.totalorder %s22, 1
      %p66 = por %p64, %p65
      %p68 = scmp.ne.s32.totalorder %s53, %s67
      %p69 = scmp.eq.s32.totalorder %s22, 0
      %p70 = por %p68, %p69
      %s72 = sadd.s32 %s71, 1
      %p75 = scmp.eq.s32.totalorder %s16, 1
      %p76 = scmp.ne.s32.totalorder %s71, %s73
      %p77 = scmp.eq.s32.totalorder %s16, 0
      %p78 = por %p76, %p77
      %p79 = scmp.ne.s32.totalorder %s71, %s73
      %p80 = scmp.eq.s32.totalorder %s21, 1
      %p81 = por %p79, %p80
      %p82 = scmp.ne.s32.totalorder %s73, %s74
      %p83 = scmp.eq.s32.totalorder %s21, 0
      %p84 = por %p82, %p83
      %p85 = scmp.ne.s32.totalorder %s73, %s74
      %p86 = scmp.eq.s32.totalorder %s22, 1
      %p87 = por %p85, %p86
      %p89 = scmp.ne.s32.totalorder %s74, %s88
      %p90 = scmp.eq.s32.totalorder %s22, 0
      %p91 = por %p89, %p90
      %s92 = ssub.s32 %s16, %s23
      %p93 = scmp.eq.s32.totalorder %s92, 0
      %s95 = sadd.s32 %s94, 1
      %s96 = scalar_select %p93, %s94, %s95
      %p99 = pneg %p93
      %p100 = scmp.eq.s32.totalorder %s16, 1
      %p101 = por %p99, %p100
      %p102 = scmp.ne.s32.totalorder %s94, %s97
      %p103 = scmp.eq.s32.totalorder %s16, 0
      %p104 = por %p102, %p103
      %p105 = scmp.ne.s32.totalorder %s94, %s97
      %p106 = scmp.eq.s32.totalorder %s21, 1
      %p107 = por %p105, %p106
      %p108 = scmp.ne.s32.totalorder %s97, %s98
      %p109 = scmp.eq.s32.totalorder %s21, 0
      %p110 = por %p108, %p109
      %p111 = scmp.ne.s32.totalorder %s97, %s98
      %p112 = scmp.eq.s32.totalorder %s22, 1
      %p113 = por %p111, %p112
      %p115 = scmp.ne.s32.totalorder %s98, %s114
      %p116 = scmp.eq.s32.totalorder %s22, 0
      %p117 = por %p115, %p116
      %p118 = scmp.le.s32.totalorder 1, %s16
      %p119 = scmp.lt.s32.totalorder %s16, 3
      %p120 = pnand %p118, %p119
      %p121 = pneg %p120
      // Predicated region
      $region9: #{tpu_custom_call.1} parent=5 // pred_check
        _
      $region10: #{tpu_custom_call.1} parent=5 // pred_check_branch
        %123 = sbr.rel (%p120) target = $region12
      $region11: #{tpu_custom_call.1} parent=5 // pred_region
        %s124 = ssub.s32 %s16, 1
        // Predicated region
        $region13: #{tpu_custom_call.1} parent=11 // pred_check
          %p125 = pneg %p63
        $region14: #{tpu_custom_call.1} parent=11 // pred_check_branch
          %127 = sbr.rel (%p125) target = $region16
        $region15: #{tpu_custom_call.1} parent=11 // pred_region
          %s129 = ssub.s32 12288, 12288
          %130 = vsyncadd [#allocation6], %s129
          %s131 = sshll.u32 [#allocation5], 4
          %s132 = int_to_ptr.vmem [resolvable:$true] %s131
          %137 = dma.hbm_to_vmem [thread:$0]  %s1, 12288, %s132, [#allocation6], 128, 128, 8
        $region16: #{tpu_custom_call.1} parent=11 // pred_fallthru
          _
        // Predicated region
        $region17: #{tpu_custom_call.1} parent=11 // pred_check
          %p138 = pneg %p84
        $region18: #{tpu_custom_call.1} parent=11 // pred_check_branch
          %140 = sbr.rel (%p138) target = $region20
        $region19: #{tpu_custom_call.1} parent=11 // pred_region
          _
        $region20: #{tpu_custom_call.1} parent=11 // pred_fallthru
          _
      $region12: #{tpu_custom_call.1} parent=5 // pred_fallthru
        _
      %p141 = scmp.lt.s32.totalorder %s16, 2
      // Predicated region
      $region21: #{tpu_custom_call.1} parent=5 // pred_check
        %p142 = pneg %p141
      $region22: #{tpu_custom_call.1} parent=5 // pred_check_branch
        %144 = sbr.rel (%p142) target = $region24
      $region23: #{tpu_custom_call.1} parent=5 // pred_region
        // Predicated region
        $region25: #{tpu_custom_call.1} parent=23 // pred_check
          %p145 = pneg %p36
        $region26: #{tpu_custom_call.1} parent=23 // pred_check_branch
          %147 = sbr.rel (%p145) target = $region28
        $region27: #{tpu_custom_call.1} parent=23 // pred_region
          %s148 = sand.u32 %s26, 1
          %s149 = scalar_lea.sflag [#allocation3], %s148
          %s150 = sand.u32 %s26, 1
          %s151 = smul.addr %s150, 16
          %s152 = scalar_lea.vmem [#allocation2], %s151
          %s154 = ssub.s32 256, 256
          %155 = vsyncadd %s149, %s154
          %s156 = smul.addr %s16, 2
          %s157 = smul.addr %s156, 128
          %s158 = scalar_lea.hbm %s0, %s157
          %s160 = sshll.u32 %s152, 4
          %s161 = int_to_ptr.vmem [resolvable:$true] %s160
          %163 = dma.hbm_to_vmem [thread:$0]  %s158, 256, %s161, %s149
        $region28: #{tpu_custom_call.1} parent=23 // pred_fallthru
          _
      $region24: #{tpu_custom_call.1} parent=5 // pred_fallthru
        _
      %p164 = scmp.le.s32.totalorder 1, %s16
      %p165 = scmp.lt.s32.totalorder %s16, 3
      %p166 = pnand %p164, %p165
      %p167 = pneg %p166
      // Predicated region
      $region29: #{tpu_custom_call.1} parent=5 // pred_check
        _
      $region30: #{tpu_custom_call.1} parent=5 // pred_check_branch
        %169 = sbr.rel (%p166) target = $region32
      $region31: #{tpu_custom_call.1} parent=5 // pred_region
        %s170 = ssub.s32 %s16, 1
        %s171 = sand.u32 %s29, 1
        %s172 = scalar_lea.sflag [#allocation3], %s171
        %s173 = sand.u32 %s29, 1
        %s174 = smul.addr %s173, 16
        %s175 = scalar_lea.vmem [#allocation2], %s174
        // Predicated region
        $region33: #{tpu_custom_call.1} parent=31 // pred_check
          %p176 = pneg %p42
        $region34: #{tpu_custom_call.1} parent=31 // pred_check_branch
          %178 = sbr.rel (%p176) target = $region36
        $region35: #{tpu_custom_call.1} parent=31 // pred_region
          %179 = dma.done %s172, 256
        $region36: #{tpu_custom_call.1} parent=31 // pred_fallthru
          _
        // Predicated region
        $region37: #{tpu_custom_call.1} parent=31 // pred_check
          %p180 = pneg %p63
        $region38: #{tpu_custom_call.1} parent=31 // pred_check_branch
          %182 = sbr.rel (%p180) target = $region40
        $region39: #{tpu_custom_call.1} parent=31 // pred_region
          %183 = dma.done [#allocation6], 12288
        $region40: #{tpu_custom_call.1} parent=31 // pred_fallthru
          _
        %s184 = sand.u32 %s29, 1
        %s185 = scalar_lea.sflag [#allocation3], %s184
        %s186 = sand.u32 %s29, 1
        %s187 = smul.addr %s186, 16
        %s188 = scalar_lea.vmem [#allocation2], %s187
        %p189 = pneg %p42
        %p190 = pneg %p39
        %p191 = pneg %p63
        %p192 = pneg %p60
        %p193 = pneg %p84
        %p194 = pneg %p81
        %p195 = pneg %p110
        %p196 = pneg %p107
        %s197 = sand.u32 %s97, 1
        %s198 = scalar_lea.sflag [#allocation4], %s197
        %s199 = sand.u32 %s97, 1
        %s200 = smul.addr %s199, 16
        %s201 = scalar_lea.vmem [#allocation7], %s200
        %v202 = vld [vmem:[%s175] sm:$0xff]
        %v203 = vld [vmem:[%s175 + $0x8] sm:$0xff]
        %v204 = vpack.c.bf16 %v202, %v202
        %v205 = vpack.c.bf16 %v203, %v203
        %s206 = scalar_lea.vmem [#allocation5], 256
        %v207 = vld [vmem:[%s206] sm:$0xff]
        %v208 = vld [vmem:[%s206 + $0x8] sm:$0xff]
        %v209 = vld [vmem:[%s206 + $0x10] sm:$0xff]
        %v210 = vld [vmem:[%s206 + $0x18] sm:$0xff]
        %v211 = vld [vmem:[%s206 + $0x20] sm:$0xff]
        %v212 = vld [vmem:[%s206 + $0x28] sm:$0xff]
        %v213 = vld [vmem:[%s206 + $0x30] sm:$0xff]
        %v214 = vld [vmem:[%s206 + $0x38] sm:$0xff]
        %v215 = vld [vmem:[%s206 + $0x40] sm:$0xff]
        %v216 = vld [vmem:[%s206 + $0x48] sm:$0xff]
        %v217 = vld [vmem:[%s206 + $0x50] sm:$0xff]
        %v218 = vld [vmem:[%s206 + $0x58] sm:$0xff]
        %v219 = vld [vmem:[%s206 + $0x60] sm:$0xff]
        %v220 = vld [vmem:[%s206 + $0x68] sm:$0xff]
        %v221 = vld [vmem:[%s206 + $0x70] sm:$0xff]
        %v222 = vld [vmem:[%s206 + $0x78] sm:$0xff]
        %v223 = vld [vmem:[%s206 + $0x80] sm:$0xff]
        %v224 = vld [vmem:[%s206 + $0x88] sm:$0xff]
        %v225 = vld [vmem:[%s206 + $0x90] sm:$0xff]
        %v226 = vld [vmem:[%s206 + $0x98] sm:$0xff]
        %v227 = vld [vmem:[%s206 + $0xa0] sm:$0xff]
        %v228 = vld [vmem:[%s206 + $0xa8] sm:$0xff]
        %v229 = vld [vmem:[%s206 + $0xb0] sm:$0xff]
        %v230 = vld [vmem:[%s206 + $0xb8] sm:$0xff]
        %v231 = vld [vmem:[%s206 + $0xc0] sm:$0xff]
        %v232 = vld [vmem:[%s206 + $0xc8] sm:$0xff]
        %v233 = vld [vmem:[%s206 + $0xd0] sm:$0xff]
        %v234 = vld [vmem:[%s206 + $0xd8] sm:$0xff]
        %v235 = vld [vmem:[%s206 + $0xe0] sm:$0xff]
        %v236 = vld [vmem:[%s206 + $0xe8] sm:$0xff]
        %v237 = vld [vmem:[%s206 + $0xf0] sm:$0xff]
        %v238 = vld [vmem:[%s206 + $0xf8] sm:$0xff]
        %v239 = vld [vmem:[%s2] sm:$0x3]
        %v241 = vlaneseq
        %v242 = vshrl.u32 %v241, 7
        %v243 = vsub.s32 0, %v242
        %v244 = vrot.slane %v239, %v243
        %v245 = vlaneseq
        %v246 = vshrl.u32 %v245, 7
        %v247 = vsub.s32 1, %v246
        %v248 = vrot.slane %v239, %v247
        %v283 = vunpack.c.l.b16 %v207
        %v284 = vunpack.c.h.b16 %v207
        %v285 = vunpack.c.l.b16 %v208
        %v286 = vunpack.c.h.b16 %v208
        %v287 = vunpack.c.l.b16 %v209
        %v288 = vunpack.c.h.b16 %v209
        %v289 = vunpack.c.l.b16 %v210
        %v290 = vunpack.c.h.b16 %v210
        %v291 = vunpack.c.l.b16 %v211
        %v292 = vunpack.c.h.b16 %v211
        %v293 = vunpack.c.l.b16 %v212
        %v294 = vunpack.c.h.b16 %v212
        %v295 = vunpack.c.l.b16 %v213
        %v296 = vunpack.c.h.b16 %v213
        %v297 = vunpack.c.l.b16 %v214
        %v298 = vunpack.c.h.b16 %v214
        %v299 = vunpack.c.l.b16 %v215
        %v300 = vunpack.c.h.b16 %v215
        %v301 = vunpack.c.l.b16 %v216
        %v302 = vunpack.c.h.b16 %v216
        %v303 = vunpack.c.l.b16 %v217
        %v304 = vunpack.c.h.b16 %v217
        %v305 = vunpack.c.l.b16 %v218
        %v306 = vunpack.c.h.b16 %v218
        %v307 = vunpack.c.l.b16 %v219
        %v308 = vunpack.c.h.b16 %v219
        %v309 = vunpack.c.l.b16 %v220
        %v310 = vunpack.c.h.b16 %v220
        %v311 = vunpack.c.l.b16 %v221
        %v312 = vunpack.c.h.b16 %v221
        %v313 = vunpack.c.l.b16 %v222
        %v314 = vunpack.c.h.b16 %v222
        %v315 = vunpack.c.l.b16 %v223
        %v316 = vunpack.c.h.b16 %v223
        %v317 = vunpack.c.l.b16 %v224
        %v318 = vunpack.c.h.b16 %v224
        %v319 = vunpack.c.l.b16 %v225
        %v320 = vunpack.c.h.b16 %v225
        %v321 = vunpack.c.l.b16 %v226
        %v322 = vunpack.c.h.b16 %v226
        %v323 = vunpack.c.l.b16 %v227
        %v324 = vunpack.c.h.b16 %v227
        %v325 = vunpack.c.l.b16 %v228
        %v326 = vunpack.c.h.b16 %v228
        %v327 = vunpack.c.l.b16 %v229
        %v328 = vunpack.c.h.b16 %v229
        %v329 = vunpack.c.l.b16 %v230
        %v330 = vunpack.c.h.b16 %v230
        %v331 = vunpack.c.l.b16 %v231
        %v332 = vunpack.c.h.b16 %v231
        %v333 = vunpack.c.l.b16 %v232
        %v334 = vunpack.c.h.b16 %v232
        %v335 = vunpack.c.l.b16 %v233
        %v336 = vunpack.c.h.b16 %v233
        %v337 = vunpack.c.l.b16 %v234
        %v338 = vunpack.c.h.b16 %v234
        %v339 = vunpack.c.l.b16 %v235
        %v340 = vunpack.c.h.b16 %v235
        %v341 = vunpack.c.l.b16 %v236
        %v342 = vunpack.c.h.b16 %v236
        %v343 = vunpack.c.l.b16 %v237
        %v344 = vunpack.c.h.b16 %v237
        %v345 = vunpack.c.l.b16 %v238
        %v346 = vunpack.c.h.b16 %v238
        %v347 = vpack.c.b16 %v285, %v283
        %v348 = vpack.c.b16 %v286, %v284
        %v349 = vpack.c.b16 %v289, %v287
        %v350 = vpack.c.b16 %v290, %v288
        %v351 = vpack.c.b16 %v293, %v291
        %v352 = vpack.c.b16 %v294, %v292
        %v353 = vpack.c.b16 %v297, %v295
        %v354 = vpack.c.b16 %v298, %v296
        %v355 = vpack.c.b16 %v301, %v299
        %v356 = vpack.c.b16 %v302, %v300
        %v357 = vpack.c.b16 %v305, %v303
        %v358 = vpack.c.b16 %v306, %v304
        %v359 = vpack.c.b16 %v309, %v307
        %v360 = vpack.c.b16 %v310, %v308
        %v361 = vpack.c.b16 %v313, %v311
        %v362 = vpack.c.b16 %v314, %v312
        %v363 = vpack.c.b16 %v317, %v315
        %v364 = vpack.c.b16 %v318, %v316
        %v365 = vpack.c.b16 %v321, %v319
        %v366 = vpack.c.b16 %v322, %v320
        %v367 = vpack.c.b16 %v325, %v323
        %v368 = vpack.c.b16 %v326, %v324
        %v369 = vpack.c.b16 %v329, %v327
        %v370 = vpack.c.b16 %v330, %v328
        %v371 = vpack.c.b16 %v333, %v331
        %v372 = vpack.c.b16 %v334, %v332
        %v373 = vpack.c.b16 %v337, %v335
        %v374 = vpack.c.b16 %v338, %v336
        %v375 = vpack.c.b16 %v341, %v339
        %v376 = vpack.c.b16 %v342, %v340
        %v377 = vpack.c.b16 %v345, %v343
        %v378 = vpack.c.b16 %v346, %v344
        %411 = vmatprep.subr.bf16.mxu0 %v348
        %412 = vmatpush1.bf16.msra.mxu0 %v347
        %413 = vmatprep.subr.bf16.mxu0 %v350
        %414 = vmatpush1.bf16.msra.mxu0 %v349
        %415 = vmatprep.subr.bf16.mxu0 %v352
        %416 = vmatpush1.bf16.msra.mxu0 %v351
        %417 = vmatprep.subr.bf16.mxu0 %v354
        %418 = vmatpush1.bf16.msra.mxu0 %v353
        %419 = vmatprep.subr.bf16.mxu0 %v356
        %420 = vmatpush1.bf16.msra.mxu0 %v355
        %421 = vmatprep.subr.bf16.mxu0 %v358
        %422 = vmatpush1.bf16.msra.mxu0 %v357
        %423 = vmatprep.subr.bf16.mxu0 %v360
        %424 = vmatpush1.bf16.msra.mxu0 %v359
        %425 = vmatprep.subr.bf16.mxu0 %v362
        %426 = vmatpush1.bf16.msra.mxu0 %v361
        %427 = vmatprep.subr.bf16.mxu0 %v364
        %428 = vmatpush1.bf16.msra.mxu0 %v363
        %429 = vmatprep.subr.bf16.mxu0 %v366
        %430 = vmatpush1.bf16.msra.mxu0 %v365
        %431 = vmatprep.subr.bf16.mxu0 %v368
        %432 = vmatpush1.bf16.msra.mxu0 %v367
        %433 = vmatprep.subr.bf16.mxu0 %v370
        %434 = vmatpush1.bf16.msra.mxu0 %v369
        %435 = vmatprep.subr.bf16.mxu0 %v372
        %436 = vmatpush1.bf16.msra.mxu0 %v371
        %437 = vmatprep.subr.bf16.mxu0 %v374
        %438 = vmatpush1.bf16.msra.mxu0 %v373
        %439 = vmatprep.subr.bf16.mxu0 %v376
        %440 = vmatpush1.bf16.msra.mxu0 %v375
        %441 = vmatprep.subr.bf16.mxu0 %v378
        %442 = vmatpush1.bf16.msra.mxu0 %v377
        %443 = vmatprep.mubr.bf16.mxu0 %v205
        %444 = vmatmul.mubr.bf16.gmra.mrb[0].mxu0 %v204
        %v445 = vpop.f32.mrb[0].mxu0
        %v446 = vadd.f32 %v244, %v445
        %v447 = vpop.f32.mrb[0].mxu0
        %v448 = vadd.f32 %v248, %v447
        %v449 = vpop.f32.mrb[0].mxu0
        %v450 = vpop.f32.mrb[0].mxu0
        %451 = vdwg.mxu0
        %452 = vst [vmem:[%s201] sm:$0xff] %v446
        %453 = vst [vmem:[%s201 + $0x8] sm:$0xff] %v448
        %v454 = vld [vmem:[%s201] sm:$0xfe]
        %v455 = vld [vmem:[%s201 + $0x8] sm:$0xfe]
        %v456 = vld [vmem:[#allocation5] sm:$0xff]
        %v457 = vld [vmem:[#allocation5 + $0x8] sm:$0xff]
        %v458 = vld [vmem:[#allocation5 + $0x10] sm:$0xff]
        %v459 = vld [vmem:[#allocation5 + $0x18] sm:$0xff]
        %v460 = vld [vmem:[#allocation5 + $0x20] sm:$0xff]
        %v461 = vld [vmem:[#allocation5 + $0x28] sm:$0xff]
        %v462 = vld [vmem:[#allocation5 + $0x30] sm:$0xff]
        %v463 = vld [vmem:[#allocation5 + $0x38] sm:$0xff]
        %v464 = vld [vmem:[#allocation5 + $0x40] sm:$0xff]
        %v465 = vld [vmem:[#allocation5 + $0x48] sm:$0xff]
        %v466 = vld [vmem:[#allocation5 + $0x50] sm:$0xff]
        %v467 = vld [vmem:[#allocation5 + $0x58] sm:$0xff]
        %v468 = vld [vmem:[#allocation5 + $0x60] sm:$0xff]
        %v469 = vld [vmem:[#allocation5 + $0x68] sm:$0xff]
        %v470 = vld [vmem:[#allocation5 + $0x70] sm:$0xff]
        %v471 = vld [vmem:[#allocation5 + $0x78] sm:$0xff]
        %v472 = vld [vmem:[#allocation5 + $0x80] sm:$0xff]
        %v473 = vld [vmem:[#allocation5 + $0x88] sm:$0xff]
        %v474 = vld [vmem:[#allocation5 + $0x90] sm:$0xff]
        %v475 = vld [vmem:[#allocation5 + $0x98] sm:$0xff]
        %v476 = vld [vmem:[#allocation5 + $0xa0] sm:$0xff]
        %v477 = vld [vmem:[#allocation5 + $0xa8] sm:$0xff]
        %v478 = vld [vmem:[#allocation5 + $0xb0] sm:$0xff]
        %v479 = vld [vmem:[#allocation5 + $0xb8] sm:$0xff]
        %v480 = vld [vmem:[#allocation5 + $0xc0] sm:$0xff]
        %v481 = vld [vmem:[#allocation5 + $0xc8] sm:$0xff]
        %v482 = vld [vmem:[#allocation5 + $0xd0] sm:$0xff]
        %v483 = vld [vmem:[#allocation5 + $0xd8] sm:$0xff]
        %v484 = vld [vmem:[#allocation5 + $0xe0] sm:$0xff]
        %v485 = vld [vmem:[#allocation5 + $0xe8] sm:$0xff]
        %v486 = vld [vmem:[#allocation5 + $0xf0] sm:$0xff]
        %v487 = vld [vmem:[#allocation5 + $0xf8] sm:$0xff]
        %v520 = vunpack.c.l.b16 %v456
        %v521 = vunpack.c.h.b16 %v456
        %v522 = vunpack.c.l.b16 %v457
        %v523 = vunpack.c.h.b16 %v457
        %v524 = vunpack.c.l.b16 %v458
        %v525 = vunpack.c.h.b16 %v458
        %v526 = vunpack.c.l.b16 %v459
        %v527 = vunpack.c.h.b16 %v459
        %v528 = vunpack.c.l.b16 %v460
        %v529 = vunpack.c.h.b16 %v460
        %v530 = vunpack.c.l.b16 %v461
        %v531 = vunpack.c.h.b16 %v461
        %v532 = vunpack.c.l.b16 %v462
        %v533 = vunpack.c.h.b16 %v462
        %v534 = vunpack.c.l.b16 %v463
        %v535 = vunpack.c.h.b16 %v463
        %v536 = vunpack.c.l.b16 %v464
        %v537 = vunpack.c.h.b16 %v464
        %v538 = vunpack.c.l.b16 %v465
        %v539 = vunpack.c.h.b16 %v465
        %v540 = vunpack.c.l.b16 %v466
        %v541 = vunpack.c.h.b16 %v466
        %v542 = vunpack.c.l.b16 %v467
        %v543 = vunpack.c.h.b16 %v467
        %v544 = vunpack.c.l.b16 %v468
        %v545 = vunpack.c.h.b16 %v468
        %v546 = vunpack.c.l.b16 %v469
        %v547 = vunpack.c.h.b16 %v469
        %v548 = vunpack.c.l.b16 %v470
        %v549 = vunpack.c.h.b16 %v470
        %v550 = vunpack.c.l.b16 %v471
        %v551 = vunpack.c.h.b16 %v471
        %v552 = vunpack.c.l.b16 %v472
        %v553 = vunpack.c.h.b16 %v472
        %v554 = vunpack.c.l.b16 %v473
        %v555 = vunpack.c.h.b16 %v473
        %v556 = vunpack.c.l.b16 %v474
        %v557 = vunpack.c.h.b16 %v474
        %v558 = vunpack.c.l.b16 %v475
        %v559 = vunpack.c.h.b16 %v475
        %v560 = vunpack.c.l.b16 %v476
        %v561 = vunpack.c.h.b16 %v476
        %v562 = vunpack.c.l.b16 %v477
        %v563 = vunpack.c.h.b16 %v477
        %v564 = vunpack.c.l.b16 %v478
        %v565 = vunpack.c.h.b16 %v478
        %v566 = vunpack.c.l.b16 %v479
        %v567 = vunpack.c.h.b16 %v479
        %v568 = vunpack.c.l.b16 %v480
        %v569 = vunpack.c.h.b16 %v480
        %v570 = vunpack.c.l.b16 %v481
        %v571 = vunpack.c.h.b16 %v481
        %v572 = vunpack.c.l.b16 %v482
        %v573 = vunpack.c.h.b16 %v482
        %v574 = vunpack.c.l.b16 %v483
        %v575 = vunpack.c.h.b16 %v483
        %v576 = vunpack.c.l.b16 %v484
        %v577 = vunpack.c.h.b16 %v484
        %v578 = vunpack.c.l.b16 %v485
        %v579 = vunpack.c.h.b16 %v485
        %v580 = vunpack.c.l.b16 %v486
        %v581 = vunpack.c.h.b16 %v486
        %v582 = vunpack.c.l.b16 %v487
        %v583 = vunpack.c.h.b16 %v487
        %v584 = vpack.c.b16 %v522, %v520
        %v585 = vpack.c.b16 %v523, %v521
        %v586 = vpack.c.b16 %v526, %v524
        %v587 = vpack.c.b16 %v527, %v525
        %v588 = vpack.c.b16 %v530, %v528
        %v589 = vpack.c.b16 %v531, %v529
        %v590 = vpack.c.b16 %v534, %v532
        %v591 = vpack.c.b16 %v535, %v533
        %v592 = vpack.c.b16 %v538, %v536
        %v593 = vpack.c.b16 %v539, %v537
        %v594 = vpack.c.b16 %v542, %v540
        %v595 = vpack.c.b16 %v543, %v541
        %v596 = vpack.c.b16 %v546, %v544
        %v597 = vpack.c.b16 %v547, %v545
        %v598 = vpack.c.b16 %v550, %v548
        %v599 = vpack.c.b16 %v551, %v549
        %v600 = vpack.c.b16 %v554, %v552
        %v601 = vpack.c.b16 %v555, %v553
        %v602 = vpack.c.b16 %v558, %v556
        %v603 = vpack.c.b16 %v559, %v557
        %v604 = vpack.c.b16 %v562, %v560
        %v605 = vpack.c.b16 %v563, %v561
        %v606 = vpack.c.b16 %v566, %v564
        %v607 = vpack.c.b16 %v567, %v565
        %v608 = vpack.c.b16 %v570, %v568
        %v609 = vpack.c.b16 %v571, %v569
        %v610 = vpack.c.b16 %v574, %v572
        %v611 = vpack.c.b16 %v575, %v573
        %v612 = vpack.c.b16 %v578, %v576
        %v613 = vpack.c.b16 %v579, %v577
        %v614 = vpack.c.b16 %v582, %v580
        %v615 = vpack.c.b16 %v583, %v581
        %648 = vmatprep.subr.bf16.mxu0 %v585
        %649 = vmatpush1.bf16.msra.mxu0 %v584
        %650 = vmatprep.subr.bf16.mxu0 %v587
        %651 = vmatpush1.bf16.msra.mxu0 %v586
        %652 = vmatprep.subr.bf16.mxu0 %v589
        %653 = vmatpush1.bf16.msra.mxu0 %v588
        %654 = vmatprep.subr.bf16.mxu0 %v591
        %655 = vmatpush1.bf16.msra.mxu0 %v590
        %656 = vmatprep.subr.bf16.mxu0 %v593
        %657 = vmatpush1.bf16.msra.mxu0 %v592
        %658 = vmatprep.subr.bf16.mxu0 %v595
        %659 = vmatpush1.bf16.msra.mxu0 %v594
        %660 = vmatprep.subr.bf16.mxu0 %v597
        %661 = vmatpush1.bf16.msra.mxu0 %v596
        %662 = vmatprep.subr.bf16.mxu0 %v599
        %663 = vmatpush1.bf16.msra.mxu0 %v598
        %664 = vmatprep.subr.bf16.mxu0 %v601
        %665 = vmatpush1.bf16.msra.mxu0 %v600
        %666 = vmatprep.subr.bf16.mxu0 %v603
        %667 = vmatpush1.bf16.msra.mxu0 %v602
        %668 = vmatprep.subr.bf16.mxu0 %v605
        %669 = vmatpush1.bf16.msra.mxu0 %v604
        %670 = vmatprep.subr.bf16.mxu0 %v607
        %671 = vmatpush1.bf16.msra.mxu0 %v606
        %672 = vmatprep.subr.bf16.mxu0 %v609
        %673 = vmatpush1.bf16.msra.mxu0 %v608
        %674 = vmatprep.subr.bf16.mxu0 %v611
        %675 = vmatpush1.bf16.msra.mxu0 %v610
        %676 = vmatprep.subr.bf16.mxu0 %v613
        %677 = vmatpush1.bf16.msra.mxu0 %v612
        %678 = vmatprep.subr.bf16.mxu0 %v615
        %679 = vmatpush1.bf16.msra.mxu0 %v614
        %680 = vmatprep.mubr.bf16.mxu0 %v205
        %681 = vmatmul.mubr.bf16.gmra.mrb[0].mxu0 %v204
        %v682 = vpop.f32.mrb[0].mxu0
        %v683 = vadd.f32 0.0, %v682
        %v684 = vpop.f32.mrb[0].mxu0
        %v685 = vadd.f32 0.0, %v684
        %v686 = vpop.f32.mrb[0].mxu0
        %v687 = vpop.f32.mrb[0].mxu0
        %688 = vdwg.mxu0
        %v691 = vrot.slane %v683, 7
        %v692 = vrot.slane %v685, 7
        %v695 = vadd.f32 %v454, %v691
        %v696 = vadd.f32 %v455, %v692
        %697 = vst [vmem:[%s201] sm:$0xfe] %v695
        %698 = vst [vmem:[%s201 + $0x8] sm:$0xfe] %v696
        %v699 = vld [vmem:[%s201] sm:$0x7f]
        %v700 = vld [vmem:[%s201 + $0x8] sm:$0x7f]
        %s701 = scalar_lea.vmem [#allocation5], 512
        %v702 = vld [vmem:[%s701] sm:$0xff]
        %v703 = vld [vmem:[%s701 + $0x8] sm:$0xff]
        %v704 = vld [vmem:[%s701 + $0x10] sm:$0xff]
        %v705 = vld [vmem:[%s701 + $0x18] sm:$0xff]
        %v706 = vld [vmem:[%s701 + $0x20] sm:$0xff]
        %v707 = vld [vmem:[%s701 + $0x28] sm:$0xff]
        %v708 = vld [vmem:[%s701 + $0x30] sm:$0xff]
        %v709 = vld [vmem:[%s701 + $0x38] sm:$0xff]
        %v710 = vld [vmem:[%s701 + $0x40] sm:$0xff]
        %v711 = vld [vmem:[%s701 + $0x48] sm:$0xff]
        %v712 = vld [vmem:[%s701 + $0x50] sm:$0xff]
        %v713 = vld [vmem:[%s701 + $0x58] sm:$0xff]
        %v714 = vld [vmem:[%s701 + $0x60] sm:$0xff]
        %v715 = vld [vmem:[%s701 + $0x68] sm:$0xff]
        %v716 = vld [vmem:[%s701 + $0x70] sm:$0xff]
        %v717 = vld [vmem:[%s701 + $0x78] sm:$0xff]
        %v718 = vld [vmem:[%s701 + $0x80] sm:$0xff]
        %v719 = vld [vmem:[%s701 + $0x88] sm:$0xff]
        %v720 = vld [vmem:[%s701 + $0x90] sm:$0xff]
        %v721 = vld [vmem:[%s701 + $0x98] sm:$0xff]
        %v722 = vld [vmem:[%s701 + $0xa0] sm:$0xff]
        %v723 = vld [vmem:[%s701 + $0xa8] sm:$0xff]
        %v724 = vld [vmem:[%s701 + $0xb0] sm:$0xff]
        %v725 = vld [vmem:[%s701 + $0xb8] sm:$0xff]
        %v726 = vld [vmem:[%s701 + $0xc0] sm:$0xff]
        %v727 = vld [vmem:[%s701 + $0xc8] sm:$0xff]
        %v728 = vld [vmem:[%s701 + $0xd0] sm:$0xff]
        %v729 = vld [vmem:[%s701 + $0xd8] sm:$0xff]
        %v730 = vld [vmem:[%s701 + $0xe0] sm:$0xff]
        %v731 = vld [vmem:[%s701 + $0xe8] sm:$0xff]
        %v732 = vld [vmem:[%s701 + $0xf0] sm:$0xff]
        %v733 = vld [vmem:[%s701 + $0xf8] sm:$0xff]
        %v735 = vshrl.u32 %v204, 16
        %v737 = vshll.u32 %v204, 16
        %v739 = vrot.slane %v737, 1
        %v740 = vor.u32 %v735, %v739
        %v742 = vshrl.u32 %v205, 16
        %v744 = vshll.u32 %v205, 16
        %v746 = vrot.slane %v744, 1
        %v747 = vor.u32 %v742, %v746
        %v782 = vunpack.c.l.b16 %v702
        %v783 = vunpack.c.h.b16 %v702
        %v784 = vunpack.c.l.b16 %v703
        %v785 = vunpack.c.h.b16 %v703
        %v786 = vunpack.c.l.b16 %v704
        %v787 = vunpack.c.h.b16 %v704
        %v788 = vunpack.c.l.b16 %v705
        %v789 = vunpack.c.h.b16 %v705
        %v790 = vunpack.c.l.b16 %v706
        %v791 = vunpack.c.h.b16 %v706
        %v792 = vunpack.c.l.b16 %v707
        %v793 = vunpack.c.h.b16 %v707
        %v794 = vunpack.c.l.b16 %v708
        %v795 = vunpack.c.h.b16 %v708
        %v796 = vunpack.c.l.b16 %v709
        %v797 = vunpack.c.h.b16 %v709
        %v798 = vunpack.c.l.b16 %v710
        %v799 = vunpack.c.h.b16 %v710
        %v800 = vunpack.c.l.b16 %v711
        %v801 = vunpack.c.h.b16 %v711
        %v802 = vunpack.c.l.b16 %v712
        %v803 = vunpack.c.h.b16 %v712
        %v804 = vunpack.c.l.b16 %v713
        %v805 = vunpack.c.h.b16 %v713
        %v806 = vunpack.c.l.b16 %v714
        %v807 = vunpack.c.h.b16 %v714
        %v808 = vunpack.c.l.b16 %v715
        %v809 = vunpack.c.h.b16 %v715
        %v810 = vunpack.c.l.b16 %v716
        %v811 = vunpack.c.h.b16 %v716
        %v812 = vunpack.c.l.b16 %v717
        %v813 = vunpack.c.h.b16 %v717
        %v814 = vunpack.c.l.b16 %v718
        %v815 = vunpack.c.h.b16 %v718
        %v816 = vunpack.c.l.b16 %v719
        %v817 = vunpack.c.h.b16 %v719
        %v818 = vunpack.c.l.b16 %v720
        %v819 = vunpack.c.h.b16 %v720
        %v820 = vunpack.c.l.b16 %v721
        %v821 = vunpack.c.h.b16 %v721
        %v822 = vunpack.c.l.b16 %v722
        %v823 = vunpack.c.h.b16 %v722
        %v824 = vunpack.c.l.b16 %v723
        %v825 = vunpack.c.h.b16 %v723
        %v826 = vunpack.c.l.b16 %v724
        %v827 = vunpack.c.h.b16 %v724
        %v828 = vunpack.c.l.b16 %v725
        %v829 = vunpack.c.h.b16 %v725
        %v830 = vunpack.c.l.b16 %v726
        %v831 = vunpack.c.h.b16 %v726
        %v832 = vunpack.c.l.b16 %v727
        %v833 = vunpack.c.h.b16 %v727
        %v834 = vunpack.c.l.b16 %v728
        %v835 = vunpack.c.h.b16 %v728
        %v836 = vunpack.c.l.b16 %v729
        %v837 = vunpack.c.h.b16 %v729
        %v838 = vunpack.c.l.b16 %v730
        %v839 = vunpack.c.h.b16 %v730
        %v840 = vunpack.c.l.b16 %v731
        %v841 = vunpack.c.h.b16 %v731
        %v842 = vunpack.c.l.b16 %v732
        %v843 = vunpack.c.h.b16 %v732
        %v844 = vunpack.c.l.b16 %v733
        %v845 = vunpack.c.h.b16 %v733
        %v846 = vpack.c.b16 %v784, %v782
        %v847 = vpack.c.b16 %v785, %v783
        %v848 = vpack.c.b16 %v788, %v786
        %v849 = vpack.c.b16 %v789, %v787
        %v850 = vpack.c.b16 %v792, %v790
        %v851 = vpack.c.b16 %v793, %v791
        %v852 = vpack.c.b16 %v796, %v794
        %v853 = vpack.c.b16 %v797, %v795
        %v854 = vpack.c.b16 %v800, %v798
        %v855 = vpack.c.b16 %v801, %v799
        %v856 = vpack.c.b16 %v804, %v802
        %v857 = vpack.c.b16 %v805, %v803
        %v858 = vpack.c.b16 %v808, %v806
        %v859 = vpack.c.b16 %v809, %v807
        %v860 = vpack.c.b16 %v812, %v810
        %v861 = vpack.c.b16 %v813, %v811
        %v862 = vpack.c.b16 %v816, %v814
        %v863 = vpack.c.b16 %v817, %v815
        %v864 = vpack.c.b16 %v820, %v818
        %v865 = vpack.c.b16 %v821, %v819
        %v866 = vpack.c.b16 %v824, %v822
        %v867 = vpack.c.b16 %v825, %v823
        %v868 = vpack.c.b16 %v828, %v826
        %v869 = vpack.c.b16 %v829, %v827
        %v870 = vpack.c.b16 %v832, %v830
        %v871 = vpack.c.b16 %v833, %v831
        %v872 = vpack.c.b16 %v836, %v834
        %v873 = vpack.c.b16 %v837, %v835
        %v874 = vpack.c.b16 %v840, %v838
        %v875 = vpack.c.b16 %v841, %v839
        %v876 = vpack.c.b16 %v844, %v842
        %v877 = vpack.c.b16 %v845, %v843
        %910 = vmatprep.subr.bf16.mxu0 %v847
        %911 = vmatpush1.bf16.msra.mxu0 %v846
        %912 = vmatprep.subr.bf16.mxu0 %v849
        %913 = vmatpush1.bf16.msra.mxu0 %v848
        %914 = vmatprep.subr.bf16.mxu0 %v851
        %915 = vmatpush1.bf16.msra.mxu0 %v850
        %916 = vmatprep.subr.bf16.mxu0 %v853
        %917 = vmatpush1.bf16.msra.mxu0 %v852
        %918 = vmatprep.subr.bf16.mxu0 %v855
        %919 = vmatpush1.bf16.msra.mxu0 %v854
        %920 = vmatprep.subr.bf16.mxu0 %v857
        %921 = vmatpush1.bf16.msra.mxu0 %v856
        %922 = vmatprep.subr.bf16.mxu0 %v859
        %923 = vmatpush1.bf16.msra.mxu0 %v858
        %924 = vmatprep.subr.bf16.mxu0 %v861
        %925 = vmatpush1.bf16.msra.mxu0 %v860
        %926 = vmatprep.subr.bf16.mxu0 %v863
        %927 = vmatpush1.bf16.msra.mxu0 %v862
        %928 = vmatprep.subr.bf16.mxu0 %v865
        %929 = vmatpush1.bf16.msra.mxu0 %v864
        %930 = vmatprep.subr.bf16.mxu0 %v867
        %931 = vmatpush1.bf16.msra.mxu0 %v866
        %932 = vmatprep.subr.bf16.mxu0 %v869
        %933 = vmatpush1.bf16.msra.mxu0 %v868
        %934 = vmatprep.subr.bf16.mxu0 %v871
        %935 = vmatpush1.bf16.msra.mxu0 %v870
        %936 = vmatprep.subr.bf16.mxu0 %v873
        %937 = vmatpush1.bf16.msra.mxu0 %v872
        %938 = vmatprep.subr.bf16.mxu0 %v875
        %939 = vmatpush1.bf16.msra.mxu0 %v874
        %940 = vmatprep.subr.bf16.mxu0 %v877
        %941 = vmatpush1.bf16.msra.mxu0 %v876
        %942 = vmatprep.mubr.bf16.mxu0 %v747
        %943 = vmatmul.mubr.bf16.gmra.mrb[0].mxu0 %v740
        %v944 = vpop.f32.mrb[0].mxu0
        %v945 = vadd.f32 0.0, %v944
        %v946 = vpop.f32.mrb[0].mxu0
        %v947 = vadd.f32 0.0, %v946
        %v948 = vpop.f32.mrb[0].mxu0
        %v949 = vpop.f32.mrb[0].mxu0
        %950 = vdwg.mxu0
        %v951 = vadd.f32 %v699, %v945
        %v952 = vadd.f32 %v700, %v947
        %953 = vst [vmem:[%s201] sm:$0x7f] %v951
        %954 = vst [vmem:[%s201 + $0x8] sm:$0x7f] %v952
        %s955 = sand.u32 %s97, 1
        %s956 = scalar_lea.sflag [#allocation4], %s955
        %s957 = sand.u32 %s97, 1
        %s958 = smul.addr %s957, 16
        %s959 = scalar_lea.vmem [#allocation7], %s958
        // Predicated region
        $region41: #{tpu_custom_call.1} parent=31 // pred_check
          %p960 = pneg %p107
        $region42: #{tpu_custom_call.1} parent=31 // pred_check_branch
          %962 = sbr.rel (%p960) target = $region44
        $region43: #{tpu_custom_call.1} parent=31 // pred_region
          %s964 = ssub.s32 256, 256
          %965 = vsyncadd %s956, %s964
          %s966 = smul.addr %s21, 2
          %s967 = smul.addr %s966, 128
          %s968 = scalar_lea.hbm %s3, %s967
          %s970 = sshll.u32 %s959, 4
          %s971 = int_to_ptr.vmem [resolvable:$true] %s970
          %973 = dma.vmem_to_hbm [thread:$0]  %s971, 256, %s968, %s956
        $region44: #{tpu_custom_call.1} parent=31 // pred_fallthru
          _
      $region32: #{tpu_custom_call.1} parent=5 // pred_fallthru
        _
      %p974 = scmp.le.s32.totalorder 2, %s16
      // Predicated region
      $region45: #{tpu_custom_call.1} parent=5 // pred_check
        %p975 = pneg %p974
      $region46: #{tpu_custom_call.1} parent=5 // pred_check_branch
        %977 = sbr.rel (%p975) target = $region48
      $region47: #{tpu_custom_call.1} parent=5 // pred_region
        %s978 = ssub.s32 %s16, 2
        // Predicated region
        $region49: #{tpu_custom_call.1} parent=47 // pred_check
          %p979 = pneg %p113
        $region50: #{tpu_custom_call.1} parent=47 // pred_check_branch
          %981 = sbr.rel (%p979) target = $region52
        $region51: #{tpu_custom_call.1} parent=47 // pred_region
          %s982 = sand.u32 %s98, 1
          %s983 = scalar_lea.sflag [#allocation4], %s982
          %s984 = sand.u32 %s98, 1
          %s985 = smul.addr %s984, 16
          %s986 = scalar_lea.vmem [#allocation7], %s985
          %987 = dma.done %s983, 256
        $region52: #{tpu_custom_call.1} parent=47 // pred_fallthru
          _
      $region48: #{tpu_custom_call.1} parent=5 // pred_fallthru
        _
    $region6: #{tpu_custom_call.1} parent=1 // loop_footer
      %s20 = sadd.s32 1, %s16
    $region7: #{tpu_custom_call.1} parent=1 // loop_footer_branch
      %15 = sbr.rel target = $region3
    $region8: #{tpu_custom_call.1} parent=1 // loop_exit
      _
    %988 = vsyncpa [#allocation3], 1
    %s989 = scalar_lea.sflag [#allocation3], 1
    %990 = vsyncpa %s989, 1
    %991 = vsyncpa [#allocation6], 1
    %992 = vsyncpa [#allocation4], 1
    %s993 = scalar_lea.sflag [#allocation4], 1
    %994 = vsyncpa %s993, 1

</llo_original>
